<compile_context>
chip_gen: v5e
topology: v5e:2x2
jax: 0.10.0
libtpu: 0.0.40
codegen_flags: <defaults>
</compile_context>

<pallas_src>
import functools

import jax
import jax.numpy as jnp
import numpy as np
from jax import lax
from jax.experimental import pallas as pl
from jax.experimental.pallas import tpu as pltpu

BN_EPS = 1e-5


def q_kernel(obs_ref, acts_ref, ow_ref, wsq_ref, rows_ref, out_ref, *, num_mid):
    """Fused Q forward: (linear -> BN(train) -> relu) stack + scalar head.

    rows_ref packs every (*, H) row parameter into one operand:
      row 0                 : action_FC weight (in_features == 1)   -> (1, H)
      row 1                 : FC_out weight row                     -> (1, H)
      row 2, lane 0         : FC_out bias
      rows 3 .. 3+NBN-1     : BN gammas (obs_BN, action_BN, BN1, middle BNs...)
      rows 3+NBN .. 3+2*NBN : BN betas
    wsq_ref stacks the square weights: [FC1_obs_half, FC1_act_half, mid_0, ...].
    """
    nbn = 3 + num_mid
    rows = rows_ref[...]                      # load packed rows once, index statically
    aw = rows[0:1, :]
    wout = rows[1:2, :]
    bout = rows[2:3, 0:1]
    gammas = rows[3:3 + nbn, :]
    betas = rows[3 + nbn:3 + 2 * nbn, :]

    def bn_relu(x, i):
        # Concurrent E[x], E[x^2]; BN folded into a single scale/shift per element.
        mean = jnp.mean(x, axis=0, keepdims=True)
        ex2 = jnp.mean(x * x, axis=0, keepdims=True)
        var = jnp.maximum(ex2 - mean * mean, 0.0)
        s = gammas[i:i + 1, :] * lax.rsqrt(var + BN_EPS)
        t = betas[i:i + 1, :] - mean * s
        return jnp.maximum(x * s + t, 0.0)

    obs = obs_ref[...]
    acts = acts_ref[...]

    # obs embedding: Linear -> BN -> ReLU   (pre-BN bias cancelled by BN mean-subtract)
    o = bn_relu(jnp.dot(obs, ow_ref[...], preferred_element_type=jnp.float32), 0)

    # action embedding: in_features == 1  ->  broadcasted outer product on the VPU
    a = bn_relu(acts * aw, 1)

    # concat([o, a]) @ W1  ==  o @ W1[:H] + a @ W1[H:]   (no in-kernel concat)
    x = bn_relu(
        jnp.dot(o, wsq_ref[0], preferred_element_type=jnp.float32)
        + jnp.dot(a, wsq_ref[1], preferred_element_type=jnp.float32),
        2,
    )

    # middle hidden layers (static unroll)
    for i in range(num_mid):
        x = bn_relu(jnp.dot(x, wsq_ref[2 + i], preferred_element_type=jnp.float32), 3 + i)

    # FC_out (out_features == 1): VPU multiply + lane reduce, no MXU drain.
    out_ref[...] = jnp.sum(x * wout, axis=-1, keepdims=True) + bout


def pack_params(params, *, num_mid):
    """Pack module parameters into the 3 kernel operands (ow, wsq, rows)."""
    H = params["ow"].shape[1]
    nbn = 3 + num_mid
    square = [params["w1o"][None], params["w1a"][None]]
    if num_mid > 0:
        square.append(params["wm"])
    wsq = jnp.concatenate(square, axis=0)                       # (2+M, H, H)

    bout_row = jnp.zeros((1, H), jnp.float32).at[0, 0].set(params["bout"][0, 0])
    rows = jnp.concatenate(
        [
            params["aw"],                                       # (1, H)
            params["wout"].T,                                   # (1, H)
            bout_row,                                           # (1, H) (lane 0 = bias)
            params["gamma"],                                    # (nbn, H)
            params["beta"],                                     # (nbn, H)
        ],
        axis=0,
    )                                                           # (3 + 2*nbn, H)
    assert rows.shape == (3 + 2 * nbn, H)
    return params["ow"], wsq, rows


def q_forward(obs, acts, params, *, num_mid):
    B = obs.shape[0]
    ow, wsq, rows = pack_params(params, num_mid=num_mid)
    return pl.pallas_call(
        functools.partial(q_kernel, num_mid=num_mid),
        out_shape=jax.ShapeDtypeStruct((B, 1), jnp.float32),
        in_specs=[pl.BlockSpec(memory_space=pltpu.MemorySpace.VMEM)] * 5,
        out_specs=pl.BlockSpec(memory_space=pltpu.MemorySpace.VMEM),
    )(obs, acts, ow, wsq, rows)


def init_params(key, num_of_states, hidden_dim, num_hidden_layers):
    """Deterministic init matching the module: kaiming_normal_(fan_in, relu), bias=0."""
    num_mid = num_hidden_layers - 1

    def kaiming(key, fan_in, fan_out):
        std = np.sqrt(2.0 / fan_in)
        return std * jax.random.normal(key, (fan_in, fan_out), dtype=jnp.float32)

    keys = jax.random.split(key, 4 + num_mid)
    H = hidden_dim
    params = {
        "ow": kaiming(keys[0], num_of_states, H),
        "ob": jnp.zeros((1, H), jnp.float32),
        "aw": kaiming(keys[1], 1, H),
        "ab": jnp.zeros((1, H), jnp.float32),
        "wout": kaiming(keys[3], H, 1),
        "bout": jnp.zeros((1, 1), jnp.float32),
    }
    w1 = kaiming(keys[2], 2 * H, H)          # FC1 weight (in=2H, out=H)
    params["w1o"] = w1[:H, :]
    params["w1a"] = w1[H:, :]
    params["b1"] = jnp.zeros((1, H), jnp.float32)
    if num_mid > 0:
        params["wm"] = jnp.stack([kaiming(keys[4 + i], H, H) for i in range(num_mid)])
        params["bm"] = jnp.zeros((num_mid, 1, H), jnp.float32)
    else:
        params["wm"] = jnp.zeros((0, H, H), jnp.float32)
        params["bm"] = jnp.zeros((0, 1, H), jnp.float32)
    num_bn = 3 + num_mid
    params["gamma"] = jnp.ones((num_bn, H), jnp.float32)        # BN affine defaults
    params["beta"] = jnp.zeros((num_bn, H), jnp.float32)
    return params


def q_reference(obs, acts, p, *, num_mid):
    """Pure-JAX reference of the torch forward (training-mode BN, biases included)."""
    def bn_relu(x, g, b):
        m = jnp.mean(x, axis=0, keepdims=True)
        v = jnp.mean((x - m) ** 2, axis=0, keepdims=True)
        return jnp.maximum((x - m) / jnp.sqrt(v + BN_EPS) * g + b, 0.0)

    o = bn_relu(obs @ p["ow"] + p["ob"], p["gamma"][0:1], p["beta"][0:1])
    a = bn_relu(acts @ p["aw"] + p["ab"], p["gamma"][1:2], p["beta"][1:2])
    x = bn_relu(o @ p["w1o"] + a @ p["w1a"] + p["b1"], p["gamma"][2:3], p["beta"][2:3])
    for i in range(num_mid):
        x = bn_relu(x @ p["wm"][i] + p["bm"][i], p["gamma"][3 + i:4 + i], p["beta"][3 + i:4 + i])
    return x @ p["wout"] + p["bout"]


if __name__ == "__main__":
    # Small config consistent with the module: cfg.hidden_dim=32, cfg.num_hidden_layers=3
    NUM_STATES = 16
    HIDDEN = 32
    NUM_HIDDEN_LAYERS = 3
    NUM_MID = NUM_HIDDEN_LAYERS - 1
    BATCH = 8

    key = jax.random.PRNGKey(0)
    k_obs, k_act, k_params = jax.random.split(key, 3)
    obs = jax.random.normal(k_obs, (BATCH, NUM_STATES), dtype=jnp.float32)
    acts = jax.random.normal(k_act, (BATCH, 1), dtype=jnp.float32)
    params = init_params(k_params, NUM_STATES, HIDDEN, NUM_HIDDEN_LAYERS)

    q = q_forward(obs, acts, params, num_mid=NUM_MID)
    q = jax.block_until_ready(q)

    q_ref = q_reference(obs, acts, params, num_mid=NUM_MID)
    np.testing.assert_allclose(np.asarray(q), np.asarray(q_ref), rtol=1e-4, atol=1e-4)

    print("KERNEL_OK")
</pallas_src>

<mosaic_0001>
module attributes {stable_mosaic.version = 11 : i64} {
  func.func @q_kernel(%arg0: memref<8x16xf32, #tpu.memory_space<vmem>>, %arg1: memref<8x1xf32, #tpu.memory_space<vmem>>, %arg2: memref<16x32xf32, #tpu.memory_space<vmem>>, %arg3: memref<4x32x32xf32, #tpu.memory_space<vmem>>, %arg4: memref<13x32xf32, #tpu.memory_space<vmem>>, %arg5: memref<8x1xf32, #tpu.memory_space<vmem>>) attributes {dimension_semantics = [], scalar_prefetch = 0 : i64, scratch_operands = 0 : i64, tpu.core_type = #tpu.core_type<tc>} {
    %c0 = arith.constant 0 : index
    %c0_0 = arith.constant 0 : index
    %0 = vector.load %arg4[%c0, %c0_0] : memref<13x32xf32, #tpu.memory_space<vmem>>, vector<13x32xf32>
    %1 = vector.extract_strided_slice %0 {offsets = [0, 0], sizes = [1, 32], strides = [1, 1]} : vector<13x32xf32> to vector<1x32xf32>
    %2 = vector.extract_strided_slice %0 {offsets = [1, 0], sizes = [1, 32], strides = [1, 1]} : vector<13x32xf32> to vector<1x32xf32>
    %3 = vector.extract_strided_slice %0 {offsets = [2, 0], sizes = [1, 1], strides = [1, 1]} : vector<13x32xf32> to vector<1x1xf32>
    %4 = vector.extract_strided_slice %0 {offsets = [3, 0], sizes = [5, 32], strides = [1, 1]} : vector<13x32xf32> to vector<5x32xf32>
    %5 = vector.extract_strided_slice %0 {offsets = [8, 0], sizes = [5, 32], strides = [1, 1]} : vector<13x32xf32> to vector<5x32xf32>
    %c0_1 = arith.constant 0 : index
    %c0_2 = arith.constant 0 : index
    %6 = vector.load %arg0[%c0_1, %c0_2] : memref<8x16xf32, #tpu.memory_space<vmem>>, vector<8x16xf32>
    %c0_3 = arith.constant 0 : index
    %c0_4 = arith.constant 0 : index
    %7 = vector.load %arg1[%c0_3, %c0_4] : memref<8x1xf32, #tpu.memory_space<vmem>>, vector<8x1xf32>
    %c0_5 = arith.constant 0 : index
    %c0_6 = arith.constant 0 : index
    %8 = vector.load %arg2[%c0_5, %c0_6] : memref<16x32xf32, #tpu.memory_space<vmem>>, vector<16x32xf32>
    %cst = arith.constant dense<0.000000e+00> : vector<8x32xf32>
    %9 = tpu.matmul %6, %8, %cst {dimension_numbers = #tpu.dot_dimension_numbers<[1], [0], [0], [1], [0, 0, 1, 1], [], []>} : vector<8x16xf32>, vector<16x32xf32>, vector<8x32xf32> -> vector<8x32xf32>
    %cst_7 = arith.constant dense<0.000000e+00> : vector<32xf32>
    %10 = vector.multi_reduction <add>, %9, %cst_7 [0] : vector<8x32xf32> to vector<32xf32>
    %11 = vector.shape_cast %10 : vector<32xf32> to vector<1x32xf32>
    %cst_8 = arith.constant 8.000000e+00 : f32
    %12 = vector.broadcast %cst_8 : f32 to vector<1x32xf32>
    %13 = arith.divf %11, %12 : vector<1x32xf32>
    %14 = arith.mulf %9, %9 : vector<8x32xf32>
    %cst_9 = arith.constant dense<0.000000e+00> : vector<32xf32>
    %15 = vector.multi_reduction <add>, %14, %cst_9 [0] : vector<8x32xf32> to vector<32xf32>
    %16 = vector.shape_cast %15 : vector<32xf32> to vector<1x32xf32>
    %cst_10 = arith.constant 8.000000e+00 : f32
    %17 = vector.broadcast %cst_10 : f32 to vector<1x32xf32>
    %18 = arith.divf %16, %17 : vector<1x32xf32>
    %19 = arith.mulf %13, %13 : vector<1x32xf32>
    %20 = arith.subf %18, %19 : vector<1x32xf32>
    %cst_11 = arith.constant 0.000000e+00 : f32
    %21 = vector.broadcast %cst_11 : f32 to vector<1x32xf32>
    %22 = arith.maximumf %20, %21 : vector<1x32xf32>
    %23 = vector.extract_strided_slice %4 {offsets = [0, 0], sizes = [1, 32], strides = [1, 1]} : vector<5x32xf32> to vector<1x32xf32>
    %cst_12 = arith.constant 9.99999974E-6 : f32
    %24 = vector.broadcast %cst_12 : f32 to vector<1x32xf32>
    %25 = arith.addf %22, %24 : vector<1x32xf32>
    %26 = math.rsqrt %25 : vector<1x32xf32>
    %27 = arith.mulf %23, %26 : vector<1x32xf32>
    %28 = vector.extract_strided_slice %5 {offsets = [0, 0], sizes = [1, 32], strides = [1, 1]} : vector<5x32xf32> to vector<1x32xf32>
    %29 = arith.mulf %13, %27 : vector<1x32xf32>
    %30 = arith.subf %28, %29 : vector<1x32xf32>
    %31 = vector.broadcast %27 : vector<1x32xf32> to vector<8x32xf32>
    %32 = arith.mulf %9, %31 : vector<8x32xf32>
    %33 = vector.broadcast %30 : vector<1x32xf32> to vector<8x32xf32>
    %34 = arith.addf %32, %33 : vector<8x32xf32>
    %cst_13 = arith.constant 0.000000e+00 : f32
    %35 = vector.broadcast %cst_13 : f32 to vector<8x32xf32>
    %36 = arith.maximumf %34, %35 : vector<8x32xf32>
    %37 = vector.broadcast %7 : vector<8x1xf32> to vector<8x32xf32>
    %38 = vector.broadcast %1 : vector<1x32xf32> to vector<8x32xf32>
    %39 = arith.mulf %37, %38 : vector<8x32xf32>
    %cst_14 = arith.constant dense<0.000000e+00> : vector<32xf32>
    %40 = vector.multi_reduction <add>, %39, %cst_14 [0] : vector<8x32xf32> to vector<32xf32>
    %41 = vector.shape_cast %40 : vector<32xf32> to vector<1x32xf32>
    %cst_15 = arith.constant 8.000000e+00 : f32
    %42 = vector.broadcast %cst_15 : f32 to vector<1x32xf32>
    %43 = arith.divf %41, %42 : vector<1x32xf32>
    %44 = arith.mulf %39, %39 : vector<8x32xf32>
    %cst_16 = arith.constant dense<0.000000e+00> : vector<32xf32>
    %45 = vector.multi_reduction <add>, %44, %cst_16 [0] : vector<8x32xf32> to vector<32xf32>
    %46 = vector.shape_cast %45 : vector<32xf32> to vector<1x32xf32>
    %cst_17 = arith.constant 8.000000e+00 : f32
    %47 = vector.broadcast %cst_17 : f32 to vector<1x32xf32>
    %48 = arith.divf %46, %47 : vector<1x32xf32>
    %49 = arith.mulf %43, %43 : vector<1x32xf32>
    %50 = arith.subf %48, %49 : vector<1x32xf32>
    %cst_18 = arith.constant 0.000000e+00 : f32
    %51 = vector.broadcast %cst_18 : f32 to vector<1x32xf32>
    %52 = arith.maximumf %50, %51 : vector<1x32xf32>
    %53 = vector.extract_strided_slice %4 {offsets = [1, 0], sizes = [1, 32], strides = [1, 1]} : vector<5x32xf32> to vector<1x32xf32>
    %cst_19 = arith.constant 9.99999974E-6 : f32
    %54 = vector.broadcast %cst_19 : f32 to vector<1x32xf32>
    %55 = arith.addf %52, %54 : vector<1x32xf32>
    %56 = math.rsqrt %55 : vector<1x32xf32>
    %57 = arith.mulf %53, %56 : vector<1x32xf32>
    %58 = vector.extract_strided_slice %5 {offsets = [1, 0], sizes = [1, 32], strides = [1, 1]} : vector<5x32xf32> to vector<1x32xf32>
    %59 = arith.mulf %43, %57 : vector<1x32xf32>
    %60 = arith.subf %58, %59 : vector<1x32xf32>
    %61 = vector.broadcast %57 : vector<1x32xf32> to vector<8x32xf32>
    %62 = arith.mulf %39, %61 : vector<8x32xf32>
    %63 = vector.broadcast %60 : vector<1x32xf32> to vector<8x32xf32>
    %64 = arith.addf %62, %63 : vector<8x32xf32>
    %cst_20 = arith.constant 0.000000e+00 : f32
    %65 = vector.broadcast %cst_20 : f32 to vector<8x32xf32>
    %66 = arith.maximumf %64, %65 : vector<8x32xf32>
    %c0_21 = arith.constant 0 : index
    %c0_22 = arith.constant 0 : index
    %c0_23 = arith.constant 0 : index
    %67 = vector.load %arg3[%c0_21, %c0_22, %c0_23] : memref<4x32x32xf32, #tpu.memory_space<vmem>>, vector<1x32x32xf32>
    %68 = vector.shape_cast %67 : vector<1x32x32xf32> to vector<32x32xf32>
    %cst_24 = arith.constant dense<0.000000e+00> : vector<8x32xf32>
    %69 = tpu.matmul %36, %68, %cst_24 {dimension_numbers = #tpu.dot_dimension_numbers<[1], [0], [0], [1], [0, 0, 1, 1], [], []>} : vector<8x32xf32>, vector<32x32xf32>, vector<8x32xf32> -> vector<8x32xf32>
    %c1 = arith.constant 1 : index
    %c0_25 = arith.constant 0 : index
    %c0_26 = arith.constant 0 : index
    %70 = vector.load %arg3[%c1, %c0_25, %c0_26] : memref<4x32x32xf32, #tpu.memory_space<vmem>>, vector<1x32x32xf32>
    %71 = vector.shape_cast %70 : vector<1x32x32xf32> to vector<32x32xf32>
    %cst_27 = arith.constant dense<0.000000e+00> : vector<8x32xf32>
    %72 = tpu.matmul %66, %71, %cst_27 {dimension_numbers = #tpu.dot_dimension_numbers<[1], [0], [0], [1], [0, 0, 1, 1], [], []>} : vector<8x32xf32>, vector<32x32xf32>, vector<8x32xf32> -> vector<8x32xf32>
    %73 = arith.addf %69, %72 : vector<8x32xf32>
    %cst_28 = arith.constant dense<0.000000e+00> : vector<32xf32>
    %74 = vector.multi_reduction <add>, %73, %cst_28 [0] : vector<8x32xf32> to vector<32xf32>
    %75 = vector.shape_cast %74 : vector<32xf32> to vector<1x32xf32>
    %cst_29 = arith.constant 8.000000e+00 : f32
    %76 = vector.broadcast %cst_29 : f32 to vector<1x32xf32>
    %77 = arith.divf %75, %76 : vector<1x32xf32>
    %78 = arith.mulf %73, %73 : vector<8x32xf32>
    %cst_30 = arith.constant dense<0.000000e+00> : vector<32xf32>
    %79 = vector.multi_reduction <add>, %78, %cst_30 [0] : vector<8x32xf32> to vector<32xf32>
    %80 = vector.shape_cast %79 : vector<32xf32> to vector<1x32xf32>
    %cst_31 = arith.constant 8.000000e+00 : f32
    %81 = vector.broadcast %cst_31 : f32 to vector<1x32xf32>
    %82 = arith.divf %80, %81 : vector<1x32xf32>
    %83 = arith.mulf %77, %77 : vector<1x32xf32>
    %84 = arith.subf %82, %83 : vector<1x32xf32>
    %cst_32 = arith.constant 0.000000e+00 : f32
    %85 = vector.broadcast %cst_32 : f32 to vector<1x32xf32>
    %86 = arith.maximumf %84, %85 : vector<1x32xf32>
    %87 = vector.extract_strided_slice %4 {offsets = [2, 0], sizes = [1, 32], strides = [1, 1]} : vector<5x32xf32> to vector<1x32xf32>
    %cst_33 = arith.constant 9.99999974E-6 : f32
    %88 = vector.broadcast %cst_33 : f32 to vector<1x32xf32>
    %89 = arith.addf %86, %88 : vector<1x32xf32>
    %90 = math.rsqrt %89 : vector<1x32xf32>
    %91 = arith.mulf %87, %90 : vector<1x32xf32>
    %92 = vector.extract_strided_slice %5 {offsets = [2, 0], sizes = [1, 32], strides = [1, 1]} : vector<5x32xf32> to vector<1x32xf32>
    %93 = arith.mulf %77, %91 : vector<1x32xf32>
    %94 = arith.subf %92, %93 : vector<1x32xf32>
    %95 = vector.broadcast %91 : vector<1x32xf32> to vector<8x32xf32>
    %96 = arith.mulf %73, %95 : vector<8x32xf32>
    %97 = vector.broadcast %94 : vector<1x32xf32> to vector<8x32xf32>
    %98 = arith.addf %96, %97 : vector<8x32xf32>
    %cst_34 = arith.constant 0.000000e+00 : f32
    %99 = vector.broadcast %cst_34 : f32 to vector<8x32xf32>
    %100 = arith.maximumf %98, %99 : vector<8x32xf32>
    %c2 = arith.constant 2 : index
    %c0_35 = arith.constant 0 : index
    %c0_36 = arith.constant 0 : index
    %101 = vector.load %arg3[%c2, %c0_35, %c0_36] : memref<4x32x32xf32, #tpu.memory_space<vmem>>, vector<1x32x32xf32>
    %102 = vector.shape_cast %101 : vector<1x32x32xf32> to vector<32x32xf32>
    %cst_37 = arith.constant dense<0.000000e+00> : vector<8x32xf32>
    %103 = tpu.matmul %100, %102, %cst_37 {dimension_numbers = #tpu.dot_dimension_numbers<[1], [0], [0], [1], [0, 0, 1, 1], [], []>} : vector<8x32xf32>, vector<32x32xf32>, vector<8x32xf32> -> vector<8x32xf32>
    %cst_38 = arith.constant dense<0.000000e+00> : vector<32xf32>
    %104 = vector.multi_reduction <add>, %103, %cst_38 [0] : vector<8x32xf32> to vector<32xf32>
    %105 = vector.shape_cast %104 : vector<32xf32> to vector<1x32xf32>
    %cst_39 = arith.constant 8.000000e+00 : f32
    %106 = vector.broadcast %cst_39 : f32 to vector<1x32xf32>
    %107 = arith.divf %105, %106 : vector<1x32xf32>
    %108 = arith.mulf %103, %103 : vector<8x32xf32>
    %cst_40 = arith.constant dense<0.000000e+00> : vector<32xf32>
    %109 = vector.multi_reduction <add>, %108, %cst_40 [0] : vector<8x32xf32> to vector<32xf32>
    %110 = vector.shape_cast %109 : vector<32xf32> to vector<1x32xf32>
    %cst_41 = arith.constant 8.000000e+00 : f32
    %111 = vector.broadcast %cst_41 : f32 to vector<1x32xf32>
    %112 = arith.divf %110, %111 : vector<1x32xf32>
    %113 = arith.mulf %107, %107 : vector<1x32xf32>
    %114 = arith.subf %112, %113 : vector<1x32xf32>
    %cst_42 = arith.constant 0.000000e+00 : f32
    %115 = vector.broadcast %cst_42 : f32 to vector<1x32xf32>
    %116 = arith.maximumf %114, %115 : vector<1x32xf32>
    %117 = vector.extract_strided_slice %4 {offsets = [3, 0], sizes = [1, 32], strides = [1, 1]} : vector<5x32xf32> to vector<1x32xf32>
    %cst_43 = arith.constant 9.99999974E-6 : f32
    %118 = vector.broadcast %cst_43 : f32 to vector<1x32xf32>
    %119 = arith.addf %116, %118 : vector<1x32xf32>
    %120 = math.rsqrt %119 : vector<1x32xf32>
    %121 = arith.mulf %117, %120 : vector<1x32xf32>
    %122 = vector.extract_strided_slice %5 {offsets = [3, 0], sizes = [1, 32], strides = [1, 1]} : vector<5x32xf32> to vector<1x32xf32>
    %123 = arith.mulf %107, %121 : vector<1x32xf32>
    %124 = arith.subf %122, %123 : vector<1x32xf32>
    %125 = vector.broadcast %121 : vector<1x32xf32> to vector<8x32xf32>
    %126 = arith.mulf %103, %125 : vector<8x32xf32>
    %127 = vector.broadcast %124 : vector<1x32xf32> to vector<8x32xf32>
    %128 = arith.addf %126, %127 : vector<8x32xf32>
    %cst_44 = arith.constant 0.000000e+00 : f32
    %129 = vector.broadcast %cst_44 : f32 to vector<8x32xf32>
    %130 = arith.maximumf %128, %129 : vector<8x32xf32>
    %c3 = arith.constant 3 : index
    %c0_45 = arith.constant 0 : index
    %c0_46 = arith.constant 0 : index
    %131 = vector.load %arg3[%c3, %c0_45, %c0_46] : memref<4x32x32xf32, #tpu.memory_space<vmem>>, vector<1x32x32xf32>
    %132 = vector.shape_cast %131 : vector<1x32x32xf32> to vector<32x32xf32>
    %cst_47 = arith.constant dense<0.000000e+00> : vector<8x32xf32>
    %133 = tpu.matmul %130, %132, %cst_47 {dimension_numbers = #tpu.dot_dimension_numbers<[1], [0], [0], [1], [0, 0, 1, 1], [], []>} : vector<8x32xf32>, vector<32x32xf32>, vector<8x32xf32> -> vector<8x32xf32>
    %cst_48 = arith.constant dense<0.000000e+00> : vector<32xf32>
    %134 = vector.multi_reduction <add>, %133, %cst_48 [0] : vector<8x32xf32> to vector<32xf32>
    %135 = vector.shape_cast %134 : vector<32xf32> to vector<1x32xf32>
    %cst_49 = arith.constant 8.000000e+00 : f32
    %136 = vector.broadcast %cst_49 : f32 to vector<1x32xf32>
    %137 = arith.divf %135, %136 : vector<1x32xf32>
    %138 = arith.mulf %133, %133 : vector<8x32xf32>
    %cst_50 = arith.constant dense<0.000000e+00> : vector<32xf32>
    %139 = vector.multi_reduction <add>, %138, %cst_50 [0] : vector<8x32xf32> to vector<32xf32>
    %140 = vector.shape_cast %139 : vector<32xf32> to vector<1x32xf32>
    %cst_51 = arith.constant 8.000000e+00 : f32
    %141 = vector.broadcast %cst_51 : f32 to vector<1x32xf32>
    %142 = arith.divf %140, %141 : vector<1x32xf32>
    %143 = arith.mulf %137, %137 : vector<1x32xf32>
    %144 = arith.subf %142, %143 : vector<1x32xf32>
    %cst_52 = arith.constant 0.000000e+00 : f32
    %145 = vector.broadcast %cst_52 : f32 to vector<1x32xf32>
    %146 = arith.maximumf %144, %145 : vector<1x32xf32>
    %147 = vector.extract_strided_slice %4 {offsets = [4, 0], sizes = [1, 32], strides = [1, 1]} : vector<5x32xf32> to vector<1x32xf32>
    %cst_53 = arith.constant 9.99999974E-6 : f32
    %148 = vector.broadcast %cst_53 : f32 to vector<1x32xf32>
    %149 = arith.addf %146, %148 : vector<1x32xf32>
    %150 = math.rsqrt %149 : vector<1x32xf32>
    %151 = arith.mulf %147, %150 : vector<1x32xf32>
    %152 = vector.extract_strided_slice %5 {offsets = [4, 0], sizes = [1, 32], strides = [1, 1]} : vector<5x32xf32> to vector<1x32xf32>
    %153 = arith.mulf %137, %151 : vector<1x32xf32>
    %154 = arith.subf %152, %153 : vector<1x32xf32>
    %155 = vector.broadcast %151 : vector<1x32xf32> to vector<8x32xf32>
    %156 = arith.mulf %133, %155 : vector<8x32xf32>
    %157 = vector.broadcast %154 : vector<1x32xf32> to vector<8x32xf32>
    %158 = arith.addf %156, %157 : vector<8x32xf32>
    %cst_54 = arith.constant 0.000000e+00 : f32
    %159 = vector.broadcast %cst_54 : f32 to vector<8x32xf32>
    %160 = arith.maximumf %158, %159 : vector<8x32xf32>
    %161 = vector.broadcast %2 : vector<1x32xf32> to vector<8x32xf32>
    %162 = arith.mulf %160, %161 : vector<8x32xf32>
    %cst_55 = arith.constant dense<0.000000e+00> : vector<8xf32>
    %163 = vector.multi_reduction <add>, %162, %cst_55 [1] : vector<8x32xf32> to vector<8xf32>
    %164 = vector.shape_cast %163 : vector<8xf32> to vector<8x1xf32>
    %165 = vector.broadcast %3 : vector<1x1xf32> to vector<8x1xf32>
    %166 = arith.addf %164, %165 : vector<8x1xf32>
    %c0_56 = arith.constant 0 : index
    %c0_57 = arith.constant 0 : index
    %167 = vector.load %arg5[%c0_56, %c0_57] : memref<8x1xf32, #tpu.memory_space<vmem>>, vector<8x1xf32>
    tpu.vector_store %arg5[%c0_56, %c0_57], %166 {strides = array<i32>} : memref<8x1xf32, #tpu.memory_space<vmem>>, vector<8x1xf32>,
    return
  }
}

</mosaic_0001>

<llo_original>
// kernel: tpu_custom_call.1
$region0: #{tpu_custom_call.1}
  #allocation0 [shape = 'u32[]', space=smem, size = 0x4, offset = 0x4, fixed_abs, tag = 'smem constant byte address 0x4 - core index']
  #allocation1 [shape = 'u32[72,128]{1,0:T(1,128)}', space=vmem, size = 0x9000, scoped, tag = 'internal scratch']
  %s0 = inlined_call_operand.vmem [shape: f32[8,16], index: 0, kind: input, shape index: {}]
  %s1 = inlined_call_operand.vmem [shape: f32[8,1], index: 1, kind: input, shape index: {}]
  %s2 = inlined_call_operand.hbm [shape: f32[16,32], index: 2, kind: input, shape index: {}]
  %s3 = inlined_call_operand.hbm [shape: f32[4,32,32], index: 3, kind: input, shape index: {}]
  %s4 = inlined_call_operand.hbm [shape: f32[13,32], index: 4, kind: input, shape index: {}]
  %s5 = inlined_call_operand.vmem [shape: f32[8,1], index: 5, kind: output, shape index: {}]
  %s6 = sld [smem:[#allocation0]]
  $region42: #{tpu_custom_call.1} parent=0
    _
  %s8 = ssub.s32 1, %s6
  %s9 = scalar_select 0, %s8, %s6
  $region1: #{tpu_custom_call.1} parent=0
    #allocation2 [shape = 'u8[8192]{0}', space=vmem, size = 0x2000, scoped, tag = 'input window, operand 2, single buffered']
    #allocation3 [shape = 's32[1]{0}', space=sflag, size = 0x4, scoped, tag = 'scoped memory for tpu_custom_call.1']
    #allocation4 [shape = 'u8[65536]{0}', space=vmem, size = 0x10000, scoped, tag = 'input window, operand 3, single buffered']
    #allocation5 [shape = 's32[1]{0}', space=sflag, size = 0x4, scoped, tag = 'scoped memory for tpu_custom_call.1']
    #allocation6 [shape = 'u8[8192]{0}', space=vmem, size = 0x2000, scoped, tag = 'input window, operand 4, single buffered']
    %10 = vsyncpa [#allocation3], 0
    %11 = vsyncpa [#allocation5], 0
    // Predicated region
    $region2: #{tpu_custom_call.1} parent=1 // pred_check
      _
    $region3: #{tpu_custom_call.1} parent=1 // pred_check_branch
      %13 = sbr.rel (0) target = $region5
    $region4: #{tpu_custom_call.1} parent=1 // pred_region
      _
    $region5: #{tpu_custom_call.1} parent=1 // pred_fallthru
      _
    // Predicated region
    $region6: #{tpu_custom_call.1} parent=1 // pred_check
      _
    $region7: #{tpu_custom_call.1} parent=1 // pred_check_branch
      %15 = sbr.rel (0) target = $region9
    $region8: #{tpu_custom_call.1} parent=1 // pred_region
      _
    $region9: #{tpu_custom_call.1} parent=1 // pred_fallthru
      _
    // Predicated region
    $region10: #{tpu_custom_call.1} parent=1 // pred_check
      _
    $region11: #{tpu_custom_call.1} parent=1 // pred_check_branch
      %17 = sbr.rel (0) target = $region13
    $region12: #{tpu_custom_call.1} parent=1 // pred_region
      %19 = vsyncadd [#allocation3], 0
      %s20 = sshll.u32 %s2, 4
      %s21 = int_to_ptr.hbm [resolvable:$true] %s20
      %s22 = sshll.u32 [#allocation2], 4
      %s23 = int_to_ptr.vmem [resolvable:$true] %s22
      %28 = dma.hbm_to_vmem [thread:$0]  %s21, 256, %s23, [#allocation3], 128, 128, 8
    $region13: #{tpu_custom_call.1} parent=1 // pred_fallthru
      _
    // Predicated region
    $region14: #{tpu_custom_call.1} parent=1 // pred_check
      _
    $region15: #{tpu_custom_call.1} parent=1 // pred_check_branch
      %30 = sbr.rel (0) target = $region17
    $region16: #{tpu_custom_call.1} parent=1 // pred_region
      %32 = vsyncadd [#allocation5], 0
      %s33 = sshll.u32 %s3, 4
      %s34 = int_to_ptr.hbm [resolvable:$true] %s33
      %s35 = sshll.u32 [#allocation4], 4
      %s36 = int_to_ptr.vmem [resolvable:$true] %s35
      %41 = dma.hbm_to_vmem [thread:$0]  %s34, 2048, %s36, [#allocation5], 128, 128, 8
    $region17: #{tpu_custom_call.1} parent=1 // pred_fallthru
      _
    // Predicated region
    $region18: #{tpu_custom_call.1} parent=1 // pred_check
      _
    $region19: #{tpu_custom_call.1} parent=1 // pred_check_branch
      %43 = sbr.rel (0) target = $region21
    $region20: #{tpu_custom_call.1} parent=1 // pred_region
      %45 = vsyncadd [#allocation5], 0
      %s46 = sshll.u32 %s4, 4
      %s47 = int_to_ptr.hbm [resolvable:$true] %s46
      %s48 = sshll.u32 [#allocation6], 4
      %s49 = int_to_ptr.vmem [resolvable:$true] %s48
      %54 = dma.hbm_to_vmem [thread:$0]  %s47, 256, %s49, [#allocation5], 128, 128, 8
    $region21: #{tpu_custom_call.1} parent=1 // pred_fallthru
      _
    // Predicated region
    $region22: #{tpu_custom_call.1} parent=1 // pred_check
      _
    $region23: #{tpu_custom_call.1} parent=1 // pred_check_branch
      %56 = sbr.rel (0) target = $region25
    $region24: #{tpu_custom_call.1} parent=1 // pred_region
      %58 = dma.done [#allocation3], 256
    $region25: #{tpu_custom_call.1} parent=1 // pred_fallthru
      _
    // Predicated region
    $region26: #{tpu_custom_call.1} parent=1 // pred_check
      _
    $region27: #{tpu_custom_call.1} parent=1 // pred_check_branch
      %60 = sbr.rel (0) target = $region29
    $region28: #{tpu_custom_call.1} parent=1 // pred_region
      %62 = dma.done [#allocation5], 2048
    $region29: #{tpu_custom_call.1} parent=1 // pred_fallthru
      _
    // Predicated region
    $region30: #{tpu_custom_call.1} parent=1 // pred_check
      _
    $region31: #{tpu_custom_call.1} parent=1 // pred_check_branch
      %64 = sbr.rel (0) target = $region33
    $region32: #{tpu_custom_call.1} parent=1 // pred_region
      %66 = dma.done [#allocation5], 256
    $region33: #{tpu_custom_call.1} parent=1 // pred_fallthru
      _
    %v67 = vld [vmem:[#allocation6] sm:$0xff]
    %v68 = vld [vmem:[#allocation6 + $0x8] sm:$0x1f]
    %v69 = vld [vmem:[%s0] sm:$0xff]
    %v70 = vld [vmem:[%s1] sm:$0xff]
    %v71 = vld [vmem:[#allocation2] sm:$0xff]
    %v72 = vld [vmem:[#allocation2 + $0x8] sm:$0xff]
    %vm73 = vcmask 130048
    %v75 = vsel %vm73, %v69, 0
    %77 = vmatpush.msra.mxu0 0.0
    %78 = vmatpush.msra.mxu0 0.0
    %79 = vmatpush.msra.mxu0 0.0
    %80 = vmatpush.msra.mxu0 0.0
    %81 = vmatpush.msra.mxu0 0.0
    %82 = vmatpush.msra.mxu0 0.0
    %83 = vmatpush.msra.mxu0 0.0
    %84 = vmatpush.msra.mxu0 0.0
    %85 = vmatpush.msra.mxu0 0.0
    %86 = vmatpush.msra.mxu0 0.0
    %87 = vmatpush.msra.mxu0 0.0
    %88 = vmatpush.msra.mxu0 0.0
    %89 = vmatpush.msra.mxu0 0.0
    %90 = vmatpush.msra.mxu0 0.0
    %91 = vmatpush.msra.mxu0 %v72
    %92 = vmatpush.msra.mxu0 %v71
    %93 = vmatmul.f32.gmra.mxu0 %v75
    %v94 = vpop.f32.mrf.mxu0
    %v95 = vadd.f32 0.0, %v94
    %96 = vdwg.mxu0
    %vm97 = vcmask 261120
    %v98 = vsel %vm97, %v95, 0.0
    %v99 = vrot.slane %v98, 4
    %v100 = vadd.f32 %v98, %v99
    %v101 = vrot.slane %v100, 2
    %v102 = vadd.f32 %v100, %v101
    %v103 = vrot.slane %v102, 1
    %v104 = vadd.f32 %v102, %v103
    %v105 = vrcp.pop 8.0
    %v106 = vmul.f32 8.0, %v105
    %v107 = vsub.f32 1.0, %v106
    %v108 = vmul.f32 %v105, %v107
    %v109 = vadd.f32 %v105, %v108
    %vm110 = vweird.f32 %v105
    %v111 = vsel %vm110, %v105, %v109
    %v112 = vmul.f32 %v104, %v111
    %v113 = vmul.f32 %v95, %v95
    %v114 = vsel %vm97, %v113, 0.0
    %v115 = vrot.slane %v114, 4
    %v116 = vadd.f32 %v114, %v115
    %v117 = vrot.slane %v116, 2
    %v118 = vadd.f32 %v116, %v117
    %v119 = vrot.slane %v118, 1
    %v120 = vadd.f32 %v118, %v119
    %v121 = vmul.f32 %v120, %v111
    %v122 = vmul.f32 %v112, %v112
    %v123 = vsub.f32 %v121, %v122
    %v124 = vmax.f32 %v123, 0.0
    %v125 = vadd.f32 %v124, 1e-05
    %v126 = vrsqrt.pop %v125
    %v127 = vmul.f32 %v126, %v125
    %v128 = vmul.f32 %v127, %v126
    %v129 = vmul.f32 0.5, %v128
    %v130 = vsub.f32 1.5, %v129
    %v131 = vmul.f32 %v126, %v130
    %vm132 = vweird.f32 %v125
    %vm133 = vweird.f32 %v126
    %vm134 = vmor %vm132, %vm133
    %v135 = vsel %vm134, %v126, %v131
    %v136 = vmul.f32 %v67, %v135
    %v137 = vmul.f32 %v112, %v136
    %v139 = vrot.slane %v137, 3
    %v141 = vsub.f32 %v68, %v139
    %v142 = vperm.slane %v136, 3
    %v143 = vmul.f32 %v95, %v142
    %v144 = vperm.slane %v141, 0
    %v145 = vadd.f32 %v143, %v144
    %v146 = vmax.f32 %v145, 0.0
    %148 = vset.pattern.permute.xlu0 0
    %149 = vperm.xlu0 %148, %v70
    %v150 = vpop.permute.xlu0 %149
    %v152 = vperm.slane %v67, 0
    %v153 = vmul.f32 %v150, %v152
    %v154 = vsel %vm97, %v153, 0.0
    %v155 = vrot.slane %v154, 4
    %v156 = vadd.f32 %v154, %v155
    %v157 = vrot.slane %v156, 2
    %v158 = vadd.f32 %v156, %v157
    %v159 = vrot.slane %v158, 1
    %v160 = vadd.f32 %v158, %v159
    %v161 = vmul.f32 %v160, %v111
    %v162 = vmul.f32 %v153, %v153
    %v163 = vsel %vm97, %v162, 0.0
    %v164 = vrot.slane %v163, 4
    %v165 = vadd.f32 %v163, %v164
    %v166 = vrot.slane %v165, 2
    %v167 = vadd.f32 %v165, %v166
    %v168 = vrot.slane %v167, 1
    %v169 = vadd.f32 %v167, %v168
    %v170 = vmul.f32 %v169, %v111
    %v171 = vmul.f32 %v161, %v161
    %v172 = vsub.f32 %v170, %v171
    %v173 = vmax.f32 %v172, 0.0
    %v174 = vadd.f32 %v173, 1e-05
    %v175 = vrsqrt.pop %v174
    %v176 = vmul.f32 %v175, %v174
    %v177 = vmul.f32 %v176, %v175
    %v178 = vmul.f32 0.5, %v177
    %v179 = vsub.f32 1.5, %v178
    %v180 = vmul.f32 %v175, %v179
    %vm181 = vweird.f32 %v174
    %vm182 = vweird.f32 %v175
    %vm183 = vmor %vm181, %vm182
    %v184 = vsel %vm183, %v175, %v180
    %v185 = vmul.f32 %v67, %v184
    %v186 = vmul.f32 %v161, %v185
    %v188 = vrot.slane %v186, 3
    %v190 = vsub.f32 %v68, %v188
    %v191 = vperm.slane %v185, 4
    %v192 = vmul.f32 %v153, %v191
    %v193 = vperm.slane %v190, 1
    %v194 = vadd.f32 %v192, %v193
    %v195 = vmax.f32 %v194, 0.0
    %v196 = vld [vmem:[#allocation4] sm:$0xff]
    %v197 = vld [vmem:[#allocation4 + $0x8] sm:$0xff]
    %v198 = vld [vmem:[#allocation4 + $0x10] sm:$0xff]
    %v199 = vld [vmem:[#allocation4 + $0x18] sm:$0xff]
    %s200 = scalar_lea.vmem [#allocation4], 32
    %v201 = vld [vmem:[%s200] sm:$0xff]
    %v202 = vld [vmem:[%s200 + $0x8] sm:$0xff]
    %v203 = vld [vmem:[%s200 + $0x10] sm:$0xff]
    %v204 = vld [vmem:[%s200 + $0x18] sm:$0xff]
    %v206 = vsel %vm97, %v195, 0
    %208 = vmatpush.msra.mxu0 0.0
    %209 = vmatpush.msra.mxu0 0.0
    %210 = vmatpush.msra.mxu0 0.0
    %211 = vmatpush.msra.mxu0 0.0
    %212 = vmatpush.msra.mxu0 0.0
    %213 = vmatpush.msra.mxu0 0.0
    %214 = vmatpush.msra.mxu0 0.0
    %215 = vmatpush.msra.mxu0 0.0
    %216 = vmatpush.msra.mxu0 0.0
    %217 = vmatpush.msra.mxu0 0.0
    %218 = vmatpush.msra.mxu0 0.0
    %219 = vmatpush.msra.mxu0 0.0
    %220 = vmatpush.msra.mxu0 %v204
    %221 = vmatpush.msra.mxu0 %v203
    %222 = vmatpush.msra.mxu0 %v202
    %223 = vmatpush.msra.mxu0 %v201
    %224 = vmatmul.f32.gmra.mxu0 %v206
    %v225 = vpop.f32.mrf.mxu0
    %v226 = vadd.f32 0.0, %v225
    %227 = vdwg.mxu0
    %v229 = vsel %vm97, %v146, 0
    %231 = vmatpush.msra.mxu0 0.0
    %232 = vmatpush.msra.mxu0 0.0
    %233 = vmatpush.msra.mxu0 0.0
    %234 = vmatpush.msra.mxu0 0.0
    %235 = vmatpush.msra.mxu0 0.0
    %236 = vmatpush.msra.mxu0 0.0
    %237 = vmatpush.msra.mxu0 0.0
    %238 = vmatpush.msra.mxu0 0.0
    %239 = vmatpush.msra.mxu0 0.0
    %240 = vmatpush.msra.mxu0 0.0
    %241 = vmatpush.msra.mxu0 0.0
    %242 = vmatpush.msra.mxu0 0.0
    %243 = vmatpush.msra.mxu0 %v199
    %244 = vmatpush.msra.mxu0 %v198
    %245 = vmatpush.msra.mxu0 %v197
    %246 = vmatpush.msra.mxu0 %v196
    %247 = vmatmul.f32.gmra.mxu0 %v229
    %v248 = vpop.f32.mrf.mxu0
    %v249 = vadd.f32 %v226, %v248
    %250 = vdwg.mxu0
    %v251 = vsel %vm97, %v249, 0.0
    %v252 = vrot.slane %v251, 4
    %v253 = vadd.f32 %v251, %v252
    %v254 = vrot.slane %v253, 2
    %v255 = vadd.f32 %v253, %v254
    %v256 = vrot.slane %v255, 1
    %v257 = vadd.f32 %v255, %v256
    %v258 = vmul.f32 %v257, %v111
    %v259 = vmul.f32 %v249, %v249
    %v260 = vsel %vm97, %v259, 0.0
    %v261 = vrot.slane %v260, 4
    %v262 = vadd.f32 %v260, %v261
    %v263 = vrot.slane %v262, 2
    %v264 = vadd.f32 %v262, %v263
    %v265 = vrot.slane %v264, 1
    %v266 = vadd.f32 %v264, %v265
    %v267 = vmul.f32 %v266, %v111
    %v268 = vmul.f32 %v258, %v258
    %v269 = vsub.f32 %v267, %v268
    %v270 = vmax.f32 %v269, 0.0
    %v271 = vadd.f32 %v270, 1e-05
    %v272 = vrsqrt.pop %v271
    %v273 = vmul.f32 %v272, %v271
    %v274 = vmul.f32 %v273, %v272
    %v275 = vmul.f32 0.5, %v274
    %v276 = vsub.f32 1.5, %v275
    %v277 = vmul.f32 %v272, %v276
    %vm278 = vweird.f32 %v271
    %vm279 = vweird.f32 %v272
    %vm280 = vmor %vm278, %vm279
    %v281 = vsel %vm280, %v272, %v277
    %v282 = vmul.f32 %v67, %v281
    %v283 = vmul.f32 %v258, %v282
    %v285 = vrot.slane %v283, 3
    %v287 = vsub.f32 %v68, %v285
    %v288 = vperm.slane %v282, 5
    %v289 = vmul.f32 %v249, %v288
    %v290 = vperm.slane %v287, 2
    %v291 = vadd.f32 %v289, %v290
    %v292 = vmax.f32 %v291, 0.0
    %s293 = scalar_lea.vmem [#allocation4], 64
    %v294 = vld [vmem:[%s293] sm:$0xff]
    %v295 = vld [vmem:[%s293 + $0x8] sm:$0xff]
    %v296 = vld [vmem:[%s293 + $0x10] sm:$0xff]
    %v297 = vld [vmem:[%s293 + $0x18] sm:$0xff]
    %v299 = vsel %vm97, %v292, 0
    %301 = vmatpush.msra.mxu0 0.0
    %302 = vmatpush.msra.mxu0 0.0
    %303 = vmatpush.msra.mxu0 0.0
    %304 = vmatpush.msra.mxu0 0.0
    %305 = vmatpush.msra.mxu0 0.0
    %306 = vmatpush.msra.mxu0 0.0
    %307 = vmatpush.msra.mxu0 0.0
    %308 = vmatpush.msra.mxu0 0.0
    %309 = vmatpush.msra.mxu0 0.0
    %310 = vmatpush.msra.mxu0 0.0
    %311 = vmatpush.msra.mxu0 0.0
    %312 = vmatpush.msra.mxu0 0.0
    %313 = vmatpush.msra.mxu0 %v297
    %314 = vmatpush.msra.mxu0 %v296
    %315 = vmatpush.msra.mxu0 %v295
    %316 = vmatpush.msra.mxu0 %v294
    %317 = vmatmul.f32.gmra.mxu0 %v299
    %v318 = vpop.f32.mrf.mxu0
    %v319 = vadd.f32 0.0, %v318
    %320 = vdwg.mxu0
    %v321 = vsel %vm97, %v319, 0.0
    %v322 = vrot.slane %v321, 4
    %v323 = vadd.f32 %v321, %v322
    %v324 = vrot.slane %v323, 2
    %v325 = vadd.f32 %v323, %v324
    %v326 = vrot.slane %v325, 1
    %v327 = vadd.f32 %v325, %v326
    %v328 = vmul.f32 %v327, %v111
    %v329 = vmul.f32 %v319, %v319
    %v330 = vsel %vm97, %v329, 0.0
    %v331 = vrot.slane %v330, 4
    %v332 = vadd.f32 %v330, %v331
    %v333 = vrot.slane %v332, 2
    %v334 = vadd.f32 %v332, %v333
    %v335 = vrot.slane %v334, 1
    %v336 = vadd.f32 %v334, %v335
    %v337 = vmul.f32 %v336, %v111
    %v338 = vmul.f32 %v328, %v328
    %v339 = vsub.f32 %v337, %v338
    %v340 = vmax.f32 %v339, 0.0
    %v341 = vadd.f32 %v340, 1e-05
    %v342 = vrsqrt.pop %v341
    %v343 = vmul.f32 %v342, %v341
    %v344 = vmul.f32 %v343, %v342
    %v345 = vmul.f32 0.5, %v344
    %v346 = vsub.f32 1.5, %v345
    %v347 = vmul.f32 %v342, %v346
    %vm348 = vweird.f32 %v341
    %vm349 = vweird.f32 %v342
    %vm350 = vmor %vm348, %vm349
    %v351 = vsel %vm350, %v342, %v347
    %v352 = vmul.f32 %v67, %v351
    %v353 = vmul.f32 %v328, %v352
    %v355 = vrot.slane %v353, 3
    %v357 = vsub.f32 %v68, %v355
    %v358 = vperm.slane %v352, 6
    %v359 = vmul.f32 %v319, %v358
    %v360 = vperm.slane %v357, 3
    %v361 = vadd.f32 %v359, %v360
    %v362 = vmax.f32 %v361, 0.0
    %s363 = scalar_lea.vmem [#allocation4], 96
    %v364 = vld [vmem:[%s363] sm:$0xff]
    %v365 = vld [vmem:[%s363 + $0x8] sm:$0xff]
    %v366 = vld [vmem:[%s363 + $0x10] sm:$0xff]
    %v367 = vld [vmem:[%s363 + $0x18] sm:$0xff]
    %v369 = vsel %vm97, %v362, 0
    %371 = vmatpush.msra.mxu0 0.0
    %372 = vmatpush.msra.mxu0 0.0
    %373 = vmatpush.msra.mxu0 0.0
    %374 = vmatpush.msra.mxu0 0.0
    %375 = vmatpush.msra.mxu0 0.0
    %376 = vmatpush.msra.mxu0 0.0
    %377 = vmatpush.msra.mxu0 0.0
    %378 = vmatpush.msra.mxu0 0.0
    %379 = vmatpush.msra.mxu0 0.0
    %380 = vmatpush.msra.mxu0 0.0
    %381 = vmatpush.msra.mxu0 0.0
    %382 = vmatpush.msra.mxu0 0.0
    %383 = vmatpush.msra.mxu0 %v367
    %384 = vmatpush.msra.mxu0 %v366
    %385 = vmatpush.msra.mxu0 %v365
    %386 = vmatpush.msra.mxu0 %v364
    %387 = vmatmul.f32.gmra.mxu0 %v369
    %v388 = vpop.f32.mrf.mxu0
    %v389 = vadd.f32 0.0, %v388
    %390 = vdwg.mxu0
    %v391 = vsel %vm97, %v389, 0.0
    %v392 = vrot.slane %v391, 4
    %v393 = vadd.f32 %v391, %v392
    %v394 = vrot.slane %v393, 2
    %v395 = vadd.f32 %v393, %v394
    %v396 = vrot.slane %v395, 1
    %v397 = vadd.f32 %v395, %v396
    %v398 = vmul.f32 %v397, %v111
    %v399 = vmul.f32 %v389, %v389
    %v400 = vsel %vm97, %v399, 0.0
    %v401 = vrot.slane %v400, 4
    %v402 = vadd.f32 %v400, %v401
    %v403 = vrot.slane %v402, 2
    %v404 = vadd.f32 %v402, %v403
    %v405 = vrot.slane %v404, 1
    %v406 = vadd.f32 %v404, %v405
    %v407 = vmul.f32 %v406, %v111
    %v408 = vmul.f32 %v398, %v398
    %v409 = vsub.f32 %v407, %v408
    %v410 = vmax.f32 %v409, 0.0
    %v411 = vadd.f32 %v410, 1e-05
    %v412 = vrsqrt.pop %v411
    %v413 = vmul.f32 %v412, %v411
    %v414 = vmul.f32 %v413, %v412
    %v415 = vmul.f32 0.5, %v414
    %v416 = vsub.f32 1.5, %v415
    %v417 = vmul.f32 %v412, %v416
    %vm418 = vweird.f32 %v411
    %vm419 = vweird.f32 %v412
    %vm420 = vmor %vm418, %vm419
    %v421 = vsel %vm420, %v412, %v417
    %v422 = vmul.f32 %v67, %v421
    %v423 = vmul.f32 %v398, %v422
    %v425 = vrot.slane %v423, 3
    %v427 = vsub.f32 %v68, %v425
    %v428 = vperm.slane %v422, 7
    %v429 = vmul.f32 %v389, %v428
    %v430 = vperm.slane %v427, 4
    %v431 = vadd.f32 %v429, %v430
    %v432 = vmax.f32 %v431, 0.0
    %v433 = vperm.slane %v67, 1
    %v434 = vmul.f32 %v432, %v433
    %v435 = vsel %vm97, %v434, 0.0
    %436 = vadd.xlane.f32.xlu0 %v435
    %v437 = vpop.xlane.xlu0 %436
    %v438 = vperm.slane %v67, 2
    %v439 = vadd.f32 %v437, %v438
    %vm440 = vcmask 7168
    %441 = vst.msk [vmem:[%s5] sm:$0xff] %vm440, %v439
    // Predicated region
    $region34: #{tpu_custom_call.1} parent=1 // pred_check
      _
    $region35: #{tpu_custom_call.1} parent=1 // pred_check_branch
      %443 = sbr.rel (0) target = $region37
    $region36: #{tpu_custom_call.1} parent=1 // pred_region
      _
    $region37: #{tpu_custom_call.1} parent=1 // pred_fallthru
      _
    // Predicated region
    $region38: #{tpu_custom_call.1} parent=1 // pred_check
      _
    $region39: #{tpu_custom_call.1} parent=1 // pred_check_branch
      %445 = sbr.rel (0) target = $region41
    $region40: #{tpu_custom_call.1} parent=1 // pred_region
      _
    $region41: #{tpu_custom_call.1} parent=1 // pred_fallthru
      _
    %446 = vsyncpa [#allocation3], 1
    %447 = vsyncpa [#allocation5], 1

</llo_original>
